<compile_context>
chip_gen: v7x
topology: tpu7x:2x2x1
jax: 0.10.0
libtpu: 0.0.40
codegen_flags: <defaults>
</compile_context>

<pallas_src>
import jax
import jax.numpy as jnp
from jax.experimental import pallas as pl
from jax.experimental.pallas import tpu as pltpu


def _row_gather_kernel(ids_ref, row_ref, out_ref):
    # ids_ref: (N,) int32, SMEM (scalar prefetch) — consumed by the index_maps.
    # row_ref: (1, 1, D) f32, VMEM — table row ids[i], DMA'd for this step.
    # out_ref: (1, 1, D) f32, VMEM.
    del ids_ref
    out_ref[...] = row_ref[...]


def embedding_lookup(indices: jax.Array, table: jax.Array) -> jax.Array:
    """Pallas equivalent of torch.nn.Embedding(...)(indices)."""
    orig_shape = indices.shape
    v, d = table.shape

    # Indices are addressing data: keep them 1-D int32 on the scalar-prefetch
    # path (SMEM), not as a lane-1 VMEM block.  Clip to the valid range
    # (documented OOB behavior; torch would raise instead).
    flat_ids = jnp.clip(indices.reshape(-1).astype(jnp.int32), 0, v - 1)
    n = flat_ids.shape[0]

    # Layout-preserving (V, D) -> (V, 1, D) view so the (1, 1, D) block's last
    # two dims equal the full array dims.
    table3 = table.reshape(v, 1, d)

    # Explicit VMEM budget: double-buffered (1, 1, D) tiles for the gathered
    # row and for the output row (each padded to an (8, 128) f32 tile),
    # plus headroom for compiler-internal scratch.
    row_tile_bytes = 8 * pl.cdiv(d, 128) * 128 * 4
    vmem_limit = 2 * 2 * row_tile_bytes + (2 << 20)

    grid_spec = pltpu.PrefetchScalarGridSpec(
        num_scalar_prefetch=1,
        grid=(n,),
        in_specs=[
            # Data-dependent row gather: block size 1 on the vocab axis, so
            # block index ids[i] selects exactly table row ids[i]; only that
            # row is DMA'd HBM->VMEM for grid step i.
            pl.BlockSpec((1, 1, d), lambda i, ids: (ids[i], 0, 0)),
        ],
        out_specs=pl.BlockSpec((1, 1, d), lambda i, ids: (i, 0, 0)),
    )

    out = pl.pallas_call(
        _row_gather_kernel,
        out_shape=jax.ShapeDtypeStruct((n, 1, d), table.dtype),
        grid_spec=grid_spec,
        compiler_params=pltpu.CompilerParams(
            dimension_semantics=("parallel",),  # independent rows -> megacore
            vmem_limit_bytes=int(vmem_limit),
        ),
    )(flat_ids, table3)

    return out.reshape(*orig_shape, d)


class PreprocModelPallas:
    """JAX/Pallas port of PreprocModel: a dict of embedding lookups."""

    def __init__(self, input_dims, embedding_sizes, *, seed=0):
        self.embedding_sizes = dict(embedding_sizes)
        self.tables = {}
        key = jax.random.PRNGKey(seed)
        for i, (ntype, emb_dim) in enumerate(sorted(embedding_sizes.items())):
            num_embeddings = input_dims[ntype]
            # torch.nn.Embedding default init: N(0, 1)
            k = jax.random.fold_in(key, i)
            self.tables[ntype] = jax.random.normal(
                k, (num_embeddings, emb_dim), dtype=jnp.float32
            )

    def forward(self, x_dict):
        # TODO(synk): fuse the per-key lookups into one pallas_call (pad/concat
        # the heterogeneous tables and present a lane-dense >=128-wide output
        # slab) to amortize per-call launch overhead and unmask the stores.
        x_dict_embed = dict(x_dict)
        for k, x in x_dict.items():
            x_dict_embed[k] = embedding_lookup(x, self.tables[k])
        return x_dict_embed

    __call__ = forward


if __name__ == "__main__":
    # Small, deterministic example consistent with the module's forward.
    input_dims = {"user": 16, "item": 32}
    embedding_sizes = {"user": 8, "item": 16}

    model = PreprocModelPallas(input_dims, embedding_sizes, seed=0)

    key = jax.random.PRNGKey(0)
    ku, ki = jax.random.split(key)
    x_dict = {
        "user": jax.random.randint(ku, (2, 8), 0, input_dims["user"], dtype=jnp.int32),
        "item": jax.random.randint(ki, (2, 8), 0, input_dims["item"], dtype=jnp.int32),
    }

    out = model(x_dict)
    out = jax.tree_util.tree_map(jax.block_until_ready, out)

    # The kernel is a verbatim f32 row copy, so results must be bit-exact
    # against a plain-JAX gather.
    for k, x in x_dict.items():
        ref = jnp.take(model.tables[k], x, axis=0)
        assert out[k].shape == x.shape + (embedding_sizes[k],)
        assert bool(jnp.array_equal(out[k], ref)), f"mismatch for key {k}"

    print("KERNEL_OK")
</pallas_src>

<mosaic_0001>
module attributes {stable_mosaic.version = 11 : i64} {
  func.func @_row_gather_kernel(%arg0: i32, %arg1: memref<16xi32, #tpu.memory_space<smem>>, %arg2: memref<1x1x8xf32, #tpu.memory_space<vmem>>, %arg3: memref<1x1x8xf32, #tpu.memory_space<vmem>>) attributes {dimension_semantics = [#tpu.dimension_semantics<parallel>], iteration_bounds = array<i64: 16>, scalar_prefetch = 1 : i64, scratch_operands = 0 : i64, tpu.core_type = #tpu.core_type<tc>, window_params = [{transform_indices = @transform_0, window_bounds = array<i64: 1, 1, 8>}, {transform_indices = @transform_1, window_bounds = array<i64: 1, 1, 8>}]} {
    %c0 = arith.constant 0 : index
    %c0_0 = arith.constant 0 : index
    %c0_1 = arith.constant 0 : index
    %0 = vector.load %arg2[%c0, %c0_0, %c0_1] : memref<1x1x8xf32, #tpu.memory_space<vmem>>, vector<1x1x8xf32>
    %c0_2 = arith.constant 0 : index
    %c0_3 = arith.constant 0 : index
    %c0_4 = arith.constant 0 : index
    %1 = vector.load %arg3[%c0_2, %c0_3, %c0_4] : memref<1x1x8xf32, #tpu.memory_space<vmem>>, vector<1x1x8xf32>
    tpu.vector_store %arg3[%c0_2, %c0_3, %c0_4], %0 {strides = array<i32>} : memref<1x1x8xf32, #tpu.memory_space<vmem>>, vector<1x1x8xf32>,
    return
  }
  func.func @transform_0(%arg0: i32, %arg1: memref<16xi32, #tpu.memory_space<smem>>) -> (i32, i32, i32) {
    %0 = arith.index_cast %arg0 : i32 to index
    %1 = memref.load %arg1[%0] : memref<16xi32, #tpu.memory_space<smem>>
    %c0_i32 = arith.constant 0 : i32
    %c0_i32_0 = arith.constant 0 : i32
    %c0_i32_1 = arith.constant 0 : i32
    return %1, %c0_i32, %c0_i32_0 : i32, i32, i32
  }
  func.func @transform_1(%arg0: i32, %arg1: memref<16xi32, #tpu.memory_space<smem>>) -> (i32, i32, i32) {
    %c0_i32 = arith.constant 0 : i32
    %c0_i32_0 = arith.constant 0 : i32
    %c0_i32_1 = arith.constant 0 : i32
    return %arg0, %c0_i32, %c0_i32_0 : i32, i32, i32
  }
}

</mosaic_0001>

<llo_original>
// kernel: tpu_custom_call.1
$region0: #{tpu_custom_call.1}
  #allocation0 [shape = 'u32[]', space=smem, size = 0x4, offset = 0x4, fixed_abs, tag = 'smem constant byte address 0x4 - core index']
  #allocation1 [shape = 'u32[144,128]{1,0:T(1,128)}', space=vmem, size = 0x12000, scoped, tag = 'internal scratch']
  #allocation2 [shape = 's32[1]{0}', space=sflag, size = 0x4, scoped, tag = 'scoped memory for tpu_custom_call.1']
  #allocation3 [shape = 'u8[512]{0}', space=smem, size = 0x200, scoped, tag = 'prefetched SMEM operand 0']
  %s0 = inlined_call_operand.vmem [shape: s32[16], index: 0, kind: input, shape index: {}]
  %s1 = inlined_call_operand.vmem [shape: f32[16,1,8], index: 1, kind: input, shape index: {}]
  %s2 = inlined_call_operand.vmem [shape: f32[16,1,8], index: 2, kind: output, shape index: {}]
  %s3 = sld [smem:[#allocation0]]
  $region37: #{tpu_custom_call.1} parent=0
    _
  %s5 = ssub.s32 1, %s3
  %s6 = scalar_select 0, %s5, %s3
  %s7 = sshll.u32 %s0, 4
  %s8 = int_to_ptr.vmem [resolvable:$true] %s7
  %10 = dma.vmem_to_smem %s8, 16, [#allocation3], [#allocation2]
  %11 = dma.done [#allocation2], 16
  %12 = sfence
  loop: start=0, step=1, limit=18
  $region2: #{tpu_custom_call.1} parent=0 // loop_pre_header
    _
  $region3: #{tpu_custom_call.1} parent=0 // loop_header
    %s14 = sphi 0, %s18
    %p15 = scmp.ge.s32.totalorder %s14, 18
    %s26 = sphi 0, %s28
    %s29 = sphi 0, %s26
    %s30 = sphi 0, %s29
    %s46 = sphi 0, %s30
    %s52 = sphi 0, %s54
    %s55 = sphi 0, %s52
    %s56 = sphi 0, %s55
    %s72 = sphi 0, %s56
  $region4: #{tpu_custom_call.1} parent=0 // loop_header_branch
    %17 = sbr.rel (%p15) target = $region8
  $region5: #{tpu_custom_call.1} parent=0 // loop_body
    %s19 = ssub.s32 %s14, 1
    %s20 = ssub.s32 %s14, 2
    %s21 = sadd.s32 %s14, 1
    %s22 = sld [smem:[#allocation3 + %s14]]
    %s23 = sld [smem:[#allocation3 + %s21]]
    %s24 = ssub.s32 %s22, %s23
    %p25 = scmp.eq.s32.totalorder %s24, 0
    %s27 = sadd.s32 %s26, 1
    %s28 = scalar_select %p25, %s26, %s27
    %p31 = pneg %p25
    %p32 = scmp.eq.s32.totalorder %s14, 15
    %p33 = por %p31, %p32
    %p34 = scmp.ne.s32.totalorder %s26, %s29
    %p35 = scmp.eq.s32.totalorder %s14, 0
    %p36 = por %p34, %p35
    %p37 = scmp.ne.s32.totalorder %s26, %s29
    %p38 = scmp.eq.s32.totalorder %s19, 15
    %p39 = por %p37, %p38
    %p40 = scmp.ne.s32.totalorder %s29, %s30
    %p41 = scmp.eq.s32.totalorder %s19, 0
    %p42 = por %p40, %p41
    %p43 = scmp.ne.s32.totalorder %s29, %s30
    %p44 = scmp.eq.s32.totalorder %s20, 15
    %p45 = por %p43, %p44
    %p47 = scmp.ne.s32.totalorder %s30, %s46
    %p48 = scmp.eq.s32.totalorder %s20, 0
    %p49 = por %p47, %p48
    %s50 = ssub.s32 %s14, %s21
    %p51 = scmp.eq.s32.totalorder %s50, 0
    %s53 = sadd.s32 %s52, 1
    %s54 = scalar_select %p51, %s52, %s53
    %p57 = pneg %p51
    %p58 = scmp.eq.s32.totalorder %s14, 15
    %p59 = por %p57, %p58
    %p60 = scmp.ne.s32.totalorder %s52, %s55
    %p61 = scmp.eq.s32.totalorder %s14, 0
    %p62 = por %p60, %p61
    %p63 = scmp.ne.s32.totalorder %s52, %s55
    %p64 = scmp.eq.s32.totalorder %s19, 15
    %p65 = por %p63, %p64
    %p66 = scmp.ne.s32.totalorder %s55, %s56
    %p67 = scmp.eq.s32.totalorder %s19, 0
    %p68 = por %p66, %p67
    %p69 = scmp.ne.s32.totalorder %s55, %s56
    %p70 = scmp.eq.s32.totalorder %s20, 15
    %p71 = por %p69, %p70
    %p73 = scmp.ne.s32.totalorder %s56, %s72
    %p74 = scmp.eq.s32.totalorder %s20, 0
    %p75 = por %p73, %p74
    %p76 = scmp.le.s32.totalorder 1, %s14
    %p77 = scmp.lt.s32.totalorder %s14, 17
    %p78 = pnand %p76, %p77
    %p79 = pneg %p78
    // Predicated region
    $region9: #{tpu_custom_call.1} parent=5 // pred_check
      _
    $region10: #{tpu_custom_call.1} parent=5 // pred_check_branch
      %81 = sbr.rel (%p78) target = $region12
    $region11: #{tpu_custom_call.1} parent=5 // pred_region
      %s82 = ssub.s32 %s14, 1
    $region12: #{tpu_custom_call.1} parent=5 // pred_fallthru
      _
    %p83 = scmp.lt.s32.totalorder %s14, 16
    // Predicated region
    $region13: #{tpu_custom_call.1} parent=5 // pred_check
      %p84 = pneg %p83
    $region14: #{tpu_custom_call.1} parent=5 // pred_check_branch
      %86 = sbr.rel (%p84) target = $region16
    $region15: #{tpu_custom_call.1} parent=5 // pred_region
      // Predicated region
      $region17: #{tpu_custom_call.1} parent=15 // pred_check
        %p87 = pneg %p36
      $region18: #{tpu_custom_call.1} parent=15 // pred_check_branch
        %89 = sbr.rel (%p87) target = $region20
      $region19: #{tpu_custom_call.1} parent=15 // pred_region
        %s90 = sld [smem:[#allocation3 + %s14]]
        %p91 = scmp.lt.s32.totalorder %s90, 15
        %s92 = scalar_select %p91, %s90, 15
        %s93 = scalar_lea.vmem %s1, %s92
        %s94 = sld [smem:[#allocation3 + %s14]]
      $region20: #{tpu_custom_call.1} parent=15 // pred_fallthru
        _
    $region16: #{tpu_custom_call.1} parent=5 // pred_fallthru
      _
    %p95 = scmp.le.s32.totalorder 1, %s14
    %p96 = scmp.lt.s32.totalorder %s14, 17
    %p97 = pnand %p95, %p96
    %p98 = pneg %p97
    // Predicated region
    $region21: #{tpu_custom_call.1} parent=5 // pred_check
      _
    $region22: #{tpu_custom_call.1} parent=5 // pred_check_branch
      %100 = sbr.rel (%p97) target = $region24
    $region23: #{tpu_custom_call.1} parent=5 // pred_region
      %s101 = ssub.s32 %s14, 1
      %s102 = sld [smem:[#allocation3 + %s19]]
      %p103 = scmp.lt.s32.totalorder %s102, 15
      %s104 = scalar_select %p103, %s102, 15
      %s105 = scalar_lea.vmem %s1, %s104
      %p106 = pneg %p42
      %p107 = pneg %p39
      %p108 = pneg %p68
      %p109 = pneg %p65
      %p110 = scmp.lt.s32.totalorder %s19, 15
      %s111 = scalar_select %p110, %s19, 15
      %s112 = scalar_lea.vmem %s2, %s111
      %s113 = sld [smem:[#allocation3 + %s19]]
      %p114 = scmp.lt.s32.totalorder %s113, 15
      %s115 = scalar_select %p114, %s113, 15
      %s116 = scalar_lea.vmem %s1, %s115
      %s117 = sld [smem:[#allocation3 + %s19]]
      %p118 = scmp.lt.s32.totalorder %s19, 15
      %s119 = scalar_select %p118, %s19, 15
      %s120 = scalar_lea.vmem %s2, %s119
      %v121 = vld [vmem:[%s116] sm:$0x1]
      %vm122 = vcmask 57344
      %123 = vst.msk [vmem:[%s120] sm:$0x1] %vm122, %v121
      %p124 = scmp.lt.s32.totalorder %s19, 15
      %s125 = scalar_select %p124, %s19, 15
      %s126 = scalar_lea.vmem %s2, %s125
      // Predicated region
      $region25: #{tpu_custom_call.1} parent=23 // pred_check
        %p127 = pneg %p65
      $region26: #{tpu_custom_call.1} parent=23 // pred_check_branch
        %129 = sbr.rel (%p127) target = $region28
      $region27: #{tpu_custom_call.1} parent=23 // pred_region
        _
      $region28: #{tpu_custom_call.1} parent=23 // pred_fallthru
        _
    $region24: #{tpu_custom_call.1} parent=5 // pred_fallthru
      _
    %p130 = scmp.le.s32.totalorder 2, %s14
    // Predicated region
    $region29: #{tpu_custom_call.1} parent=5 // pred_check
      %p131 = pneg %p130
    $region30: #{tpu_custom_call.1} parent=5 // pred_check_branch
      %133 = sbr.rel (%p131) target = $region32
    $region31: #{tpu_custom_call.1} parent=5 // pred_region
      %s134 = ssub.s32 %s14, 2
      // Predicated region
      $region33: #{tpu_custom_call.1} parent=31 // pred_check
        %p135 = pneg %p71
      $region34: #{tpu_custom_call.1} parent=31 // pred_check_branch
        %137 = sbr.rel (%p135) target = $region36
      $region35: #{tpu_custom_call.1} parent=31 // pred_region
        %p138 = scmp.lt.s32.totalorder %s20, 15
        %s139 = scalar_select %p138, %s20, 15
        %s140 = scalar_lea.vmem %s2, %s139
      $region36: #{tpu_custom_call.1} parent=31 // pred_fallthru
        _
    $region32: #{tpu_custom_call.1} parent=5 // pred_fallthru
      _
  $region6: #{tpu_custom_call.1} parent=0 // loop_footer
    %s18 = sadd.s32 1, %s14
  $region7: #{tpu_custom_call.1} parent=0 // loop_footer_branch
    %13 = sbr.rel target = $region3
  $region8: #{tpu_custom_call.1} parent=0 // loop_exit
    _

</llo_original>
